<compile_context>
chip_gen: v6e
topology: v6e:2x2x1
jax: 0.10.0
libtpu: 0.0.40
codegen_flags: <defaults>
</compile_context>

<pallas_src>
import numpy as np
import jax
import jax.numpy as jnp
from jax.experimental import pallas as pl
from jax.experimental.pallas import tpu as pltpu

# ---------------------------------------------------------------------------
# Module configuration (OP_NAME / COMB_NAME are external constants upstream).
# ---------------------------------------------------------------------------
OP_NAME = ["identity", "conv3", "conv5", "maxpool", "avgpool", "sep3", "sep5", "zero"]
COMB_NAME = ["add", "mul", "concat", "attn"]

EMBEDDING_SIZE = 16
HIDDEN_SIZE = 32                      # 4*H = 128 = one lane vreg
STEPS = 4
LEN_NODES = STEPS + 1                 # 5
LEN_OPS = len(OP_NAME)                # 8
LEN_COMBS = len(COMB_NAME)            # 4
LEN_ACTION = LEN_NODES + LEN_OPS + LEN_COMBS   # 17
START_TOKEN = LEN_NODES + LEN_OPS              # 13 (initial input in sample())

NUM_DECODERS = STEPS + 2              # 4 node decoders + op + comb = 6
GATE_W = 4 * HIDDEN_SIZE              # 128
L_PAD = 128                           # logits padded to one full lane vreg
EMB_ROWS = 24                         # 17 token rows padded to a multiple of 8
TOTAL_STEPS = 2 * STEPS * 5           # 40 forward() calls in Controller.sample()
NEG_INF = -1e30


# ---------------------------------------------------------------------------
# Fused kernel: 40 x (embedding -> LSTMCell -> decoder -> categorical sample)
# ---------------------------------------------------------------------------
def _controller_sample_kernel(
        dec_id_ref, off_ref,                  # scalar-prefetch schedule (SMEM)
        emb_gate_ref, w_hh_ref,               # weights resident in VMEM
        dec_w_ref, dec_b_ref, gumbel_ref,     # per-step blocks (decoder + noise)
        logits_ref, action_ref,               # per-step lane-dense outputs
        h_scr, c_scr, tok_scr):               # state carried across grid steps
    del dec_id_ref                            # only consumed by the index_maps
    s = pl.program_id(0)
    H = HIDDEN_SIZE

    @pl.when(s == 0)
    def _():
        h_scr[...] = jnp.zeros_like(h_scr)
        c_scr[...] = jnp.zeros_like(c_scr)
        tok_scr[...] = jnp.full((1, 1), START_TOKEN, jnp.int32)

    h = h_scr[...]                            # (1, H)
    c = c_scr[...]                            # (1, H)
    tok = tok_scr[...]                        # (1, 1) int32

    # Embedding gather fused with the LSTM input projection + biases:
    #   gates_x = onehot(tok) @ (Emb @ W_ih^T + b_ih + b_hh)
    row_iota = jax.lax.broadcasted_iota(jnp.int32, (1, EMB_ROWS), 1)
    onehot = (row_iota == tok).astype(jnp.float32)               # (1, 24)
    gates = (jnp.dot(onehot, emb_gate_ref[...],
                     preferred_element_type=jnp.float32)
             + jnp.dot(h, w_hh_ref[...],
                       preferred_element_type=jnp.float32))      # (1, 128)

    # PyTorch LSTMCell gate order: i, f, g, o
    i_g = jax.nn.sigmoid(gates[:, 0:H])
    f_g = jax.nn.sigmoid(gates[:, H:2 * H])
    g_g = jnp.tanh(gates[:, 2 * H:3 * H])
    o_g = jax.nn.sigmoid(gates[:, 3 * H:4 * H])

    c_new = f_g * c + i_g * g_g
    h_new = o_g * jnp.tanh(c_new)
    h_scr[...] = h_new
    c_scr[...] = c_new

    # Decoder selected by the prefetched schedule; padded columns carry -1e30
    # bias so they are already masked out of softmax / sampling.
    logits = (jnp.dot(h_new, dec_w_ref[0], preferred_element_type=jnp.float32)
              + dec_b_ref[0])                                    # (1, 128)
    logits_ref[0] = logits

    # In-kernel Gumbel-max categorical sample (noise supplied by the host).
    scores = logits + gumbel_ref[0]
    m = jnp.max(scores, axis=-1, keepdims=True)                  # (1, 1)
    lane = jax.lax.broadcasted_iota(jnp.int32, (1, L_PAD), 1).astype(jnp.float32)
    cand = jnp.where(scores >= m, lane, jnp.float32(L_PAD))
    action_i = jnp.min(cand, axis=-1, keepdims=True).astype(jnp.int32)   # (1, 1)
    action_ref[0] = jnp.broadcast_to(action_i, (1, L_PAD))

    # Next input token = sampled action + per-step offset (0 / len_nodes / ...).
    tok_scr[...] = action_i + off_ref[s]


# ---------------------------------------------------------------------------
# One-time parameter packing (review item: hoist all glue out of the step path)
# ---------------------------------------------------------------------------
def pack_controller_params(params):
    emb_gate = (params["embedding"] @ params["w_ih"].T
                + params["b_ih"] + params["b_hh"])               # (17, 128)
    emb_gate_pad = jnp.zeros((EMB_ROWS, GATE_W), jnp.float32).at[
        :LEN_ACTION].set(emb_gate)
    w_hh_t = params["w_hh"].T                                    # (32, 128)

    dec_list = list(params["node_decoders"]) + [
        (params["op_decoder_w"], params["op_decoder_b"]),
        (params["comb_decoder_w"], params["comb_decoder_b"]),
    ]
    dec_w_all = jnp.zeros((NUM_DECODERS, HIDDEN_SIZE, L_PAD), jnp.float32)
    dec_b_all = jnp.full((NUM_DECODERS, 1, L_PAD), NEG_INF, jnp.float32)
    for d, (w, b) in enumerate(dec_list):
        L = w.shape[0]
        dec_w_all = dec_w_all.at[d, :, :L].set(w.T)
        dec_b_all = dec_b_all.at[d, 0, :L].set(b)
    return {"emb_gate": emb_gate_pad, "w_hh_t": w_hh_t,
            "dec_w_all": dec_w_all, "dec_b_all": dec_b_all}


def build_schedule():
    """Replays the decoder order / input offsets of Controller.sample()."""
    dec_ids, offsets, lengths = [], [], []
    for _type in range(2):
        for node in range(STEPS):
            plan = [
                (node,      0,                   node + 2),   # node_decoders[node]
                (node,      0,                   node + 2),   # node_decoders[node]
                (STEPS,     LEN_NODES,           LEN_OPS),    # op_decoder
                (STEPS,     LEN_NODES,           LEN_OPS),    # op_decoder
                (STEPS + 1, LEN_NODES + LEN_OPS, LEN_COMBS),  # comb_decoder
            ]
            for d, off, L in plan:
                dec_ids.append(d)
                offsets.append(off)
                lengths.append(L)
    return (np.asarray(dec_ids, np.int32),
            np.asarray(offsets, np.int32),
            np.asarray(lengths, np.int32))


# ---------------------------------------------------------------------------
# Wrapper: one pallas_call for the whole autoregressive sample loop.
# ---------------------------------------------------------------------------
def controller_sample(packed, dec_ids, offsets, gumbel):
    gumbel3 = gumbel.reshape(TOTAL_STEPS, 1, L_PAD)

    grid_spec = pltpu.PrefetchScalarGridSpec(
        num_scalar_prefetch=2,
        grid=(TOTAL_STEPS,),
        in_specs=[
            # resident weights (constant block index -> fetched once)
            pl.BlockSpec((EMB_ROWS, GATE_W), lambda s, dec, off: (0, 0)),
            pl.BlockSpec((HIDDEN_SIZE, GATE_W), lambda s, dec, off: (0, 0)),
            # per-step decoder weight/bias, selected by prefetched schedule
            pl.BlockSpec((1, HIDDEN_SIZE, L_PAD),
                         lambda s, dec, off: (dec[s], 0, 0)),
            pl.BlockSpec((1, 1, L_PAD), lambda s, dec, off: (dec[s], 0, 0)),
            # per-step gumbel noise row
            pl.BlockSpec((1, 1, L_PAD), lambda s, dec, off: (s, 0, 0)),
        ],
        out_specs=[
            pl.BlockSpec((1, 1, L_PAD), lambda s, dec, off: (s, 0, 0)),
            pl.BlockSpec((1, 1, L_PAD), lambda s, dec, off: (s, 0, 0)),
        ],
        scratch_shapes=[
            pltpu.VMEM((1, HIDDEN_SIZE), jnp.float32),   # h_t
            pltpu.VMEM((1, HIDDEN_SIZE), jnp.float32),   # c_t
            pltpu.VMEM((1, 1), jnp.int32),               # current input token
        ],
    )

    logits_out, action_out = pl.pallas_call(
        _controller_sample_kernel,
        out_shape=(
            jax.ShapeDtypeStruct((TOTAL_STEPS, 1, L_PAD), jnp.float32),
            jax.ShapeDtypeStruct((TOTAL_STEPS, 1, L_PAD), jnp.int32),
        ),
        grid_spec=grid_spec,
        compiler_params=pltpu.CompilerParams(
            dimension_semantics=("arbitrary",)),   # strictly sequential loop
    )(dec_ids, offsets,
      packed["emb_gate"], packed["w_hh_t"],
      packed["dec_w_all"], packed["dec_b_all"], gumbel3)

    logits_out = logits_out.reshape(TOTAL_STEPS, L_PAD)
    actions_index = action_out.reshape(TOTAL_STEPS, L_PAD)[:, 0]

    # softmax / log_softmax live outside forward() in the original module too.
    probs = jax.nn.softmax(logits_out, axis=-1)
    log_probs = jax.nn.log_softmax(logits_out, axis=-1)
    actions_p = jnp.take_along_axis(probs, actions_index[:, None], axis=1)[:, 0]
    actions_log_p = jnp.take_along_axis(log_probs,
                                        actions_index[:, None], axis=1)[:, 0]
    return actions_p, actions_log_p, actions_index, logits_out


# ---------------------------------------------------------------------------
# Parameter init (mirrors init_parameters: U(-0.1, 0.1), decoder biases = 0).
# ---------------------------------------------------------------------------
def init_params(key):
    init_range = 0.1
    ks = jax.random.split(key, 8 + STEPS)
    u = lambda k, shape: jax.random.uniform(k, shape, jnp.float32,
                                            -init_range, init_range)
    return {
        "embedding": u(ks[0], (LEN_ACTION, EMBEDDING_SIZE)),
        "w_ih": u(ks[1], (4 * HIDDEN_SIZE, EMBEDDING_SIZE)),
        "w_hh": u(ks[2], (4 * HIDDEN_SIZE, HIDDEN_SIZE)),
        "b_ih": u(ks[3], (4 * HIDDEN_SIZE,)),
        "b_hh": u(ks[4], (4 * HIDDEN_SIZE,)),
        "op_decoder_w": u(ks[5], (LEN_OPS, HIDDEN_SIZE)),
        "op_decoder_b": jnp.zeros((LEN_OPS,), jnp.float32),
        "comb_decoder_w": u(ks[6], (LEN_COMBS, HIDDEN_SIZE)),
        "comb_decoder_b": jnp.zeros((LEN_COMBS,), jnp.float32),
        "node_decoders": [
            (u(ks[8 + s], (s + 2, HIDDEN_SIZE)), jnp.zeros((s + 2,), jnp.float32))
            for s in range(STEPS)
        ],
    }


# Pure-JAX reference replaying the literal PyTorch forward()/sample() math.
def _reference_sample(params, dec_ids, offsets, lengths, gumbel):
    dec_list = list(params["node_decoders"]) + [
        (params["op_decoder_w"], params["op_decoder_b"]),
        (params["comb_decoder_w"], params["comb_decoder_b"]),
    ]
    H = HIDDEN_SIZE
    h = jnp.zeros((1, H), jnp.float32)
    c = jnp.zeros((1, H), jnp.float32)
    tok = START_TOKEN
    logits_rows, acts, ps, logps = [], [], [], []
    for s in range(TOTAL_STEPS):
        x = params["embedding"][tok][None, :]
        gates = (x @ params["w_ih"].T + params["b_ih"]
                 + h @ params["w_hh"].T + params["b_hh"])
        i = jax.nn.sigmoid(gates[:, 0:H])
        f = jax.nn.sigmoid(gates[:, H:2 * H])
        g = jnp.tanh(gates[:, 2 * H:3 * H])
        o = jax.nn.sigmoid(gates[:, 3 * H:4 * H])
        c = f * c + i * g
        h = o * jnp.tanh(c)
        w, b = dec_list[int(dec_ids[s])]
        logits = h @ w.T + b
        L = int(lengths[s])
        scores = logits[0] + gumbel[s, :L]
        a = int(jnp.argmax(scores))
        ps.append(float(jax.nn.softmax(logits[0])[a]))
        logps.append(float(jax.nn.log_softmax(logits[0])[a]))
        logits_rows.append(np.asarray(logits[0]))
        acts.append(a)
        tok = a + int(offsets[s])
    return logits_rows, np.asarray(acts), np.asarray(ps), np.asarray(logps)


if __name__ == "__main__":
    key = jax.random.PRNGKey(0)
    pkey, gkey = jax.random.split(key)
    params = init_params(pkey)
    packed = pack_controller_params(params)          # one-time weight packing

    dec_ids_np, offsets_np, lengths_np = build_schedule()
    dec_ids = jnp.asarray(dec_ids_np)
    offsets = jnp.asarray(offsets_np)

    # Deterministic Gumbel noise so the in-kernel sampler is verifiable.
    u = jax.random.uniform(gkey, (TOTAL_STEPS, L_PAD), jnp.float32,
                           1e-6, 1.0 - 1e-6)
    gumbel = -jnp.log(-jnp.log(u))

    actions_p, actions_log_p, actions_index, logits_out = controller_sample(
        packed, dec_ids, offsets, gumbel)
    jax.block_until_ready((actions_p, actions_log_p, actions_index, logits_out))

    ref_logits, ref_actions, ref_p, ref_logp = _reference_sample(
        params, dec_ids_np, offsets_np, lengths_np, np.asarray(gumbel))

    np.testing.assert_array_equal(np.asarray(actions_index), ref_actions)
    for s in range(TOTAL_STEPS):
        L = int(lengths_np[s])
        np.testing.assert_allclose(np.asarray(logits_out[s, :L]), ref_logits[s],
                                   rtol=1e-4, atol=1e-4)
    np.testing.assert_allclose(np.asarray(actions_p), ref_p,
                               rtol=1e-4, atol=1e-5)
    np.testing.assert_allclose(np.asarray(actions_log_p), ref_logp,
                               rtol=1e-4, atol=1e-5)

    print("KERNEL_OK")
</pallas_src>

<mosaic_0001>
module attributes {stable_mosaic.version = 11 : i64} {
  func.func @_controller_sample_kernel(%arg0: i32, %arg1: memref<40xi32, #tpu.memory_space<smem>>, %arg2: memref<40xi32, #tpu.memory_space<smem>>, %arg3: memref<24x128xf32, #tpu.memory_space<vmem>>, %arg4: memref<32x128xf32, #tpu.memory_space<vmem>>, %arg5: memref<1x32x128xf32, #tpu.memory_space<vmem>>, %arg6: memref<1x1x128xf32, #tpu.memory_space<vmem>>, %arg7: memref<1x1x128xf32, #tpu.memory_space<vmem>>, %arg8: memref<1x1x128xf32, #tpu.memory_space<vmem>>, %arg9: memref<1x1x128xi32, #tpu.memory_space<vmem>>, %arg10: memref<1x32xf32, #tpu.memory_space<vmem>>, %arg11: memref<1x32xf32, #tpu.memory_space<vmem>>, %arg12: memref<1x1xi32, #tpu.memory_space<vmem>>) attributes {dimension_semantics = [#tpu.dimension_semantics<arbitrary>], iteration_bounds = array<i64: 40>, scalar_prefetch = 2 : i64, scratch_operands = 3 : i64, tpu.core_type = #tpu.core_type<tc>, window_params = [{pipeline_mode = #tpu.pipeline_mode<synchronous>, transform_indices = @transform_0, window_bounds = array<i64: 24, 128>}, {pipeline_mode = #tpu.pipeline_mode<synchronous>, transform_indices = @transform_1, window_bounds = array<i64: 32, 128>}, {transform_indices = @transform_2, window_bounds = array<i64: 1, 32, 128>}, {transform_indices = @transform_3, window_bounds = array<i64: 1, 1, 128>}, {transform_indices = @transform_4, window_bounds = array<i64: 1, 1, 128>}, {transform_indices = @transform_5, window_bounds = array<i64: 1, 1, 128>}, {transform_indices = @transform_6, window_bounds = array<i64: 1, 1, 128>}]} {
    %c0_i32 = arith.constant 0 : i32
    %0 = arith.cmpi eq, %arg0, %c0_i32 : i32
    %1 = arith.extui %0 : i1 to i32
    %c0_i32_0 = arith.constant 0 : i32
    %2 = arith.cmpi ne, %1, %c0_i32_0 : i32
    scf.if %2 {
      %cst_39 = arith.constant 0.000000e+00 : f32
      %76 = vector.broadcast %cst_39 : f32 to vector<1x32xf32>
      %c0_40 = arith.constant 0 : index
      %c0_41 = arith.constant 0 : index
      %77 = vector.load %arg10[%c0_40, %c0_41] : memref<1x32xf32, #tpu.memory_space<vmem>>, vector<1x32xf32>
      tpu.vector_store %arg10[%c0_40, %c0_41], %76 {strides = array<i32>} : memref<1x32xf32, #tpu.memory_space<vmem>>, vector<1x32xf32>,
      %cst_42 = arith.constant 0.000000e+00 : f32
      %78 = vector.broadcast %cst_42 : f32 to vector<1x32xf32>
      %c0_43 = arith.constant 0 : index
      %c0_44 = arith.constant 0 : index
      %79 = vector.load %arg11[%c0_43, %c0_44] : memref<1x32xf32, #tpu.memory_space<vmem>>, vector<1x32xf32>
      tpu.vector_store %arg11[%c0_43, %c0_44], %78 {strides = array<i32>} : memref<1x32xf32, #tpu.memory_space<vmem>>, vector<1x32xf32>,
      %c13_i32 = arith.constant 13 : i32
      %80 = vector.broadcast %c13_i32 : i32 to vector<1x1xi32>
      %c0_45 = arith.constant 0 : index
      %c0_46 = arith.constant 0 : index
      %81 = vector.load %arg12[%c0_45, %c0_46] : memref<1x1xi32, #tpu.memory_space<vmem>>, vector<1x1xi32>
      tpu.vector_store %arg12[%c0_45, %c0_46], %80 {strides = array<i32>} : memref<1x1xi32, #tpu.memory_space<vmem>>, vector<1x1xi32>,
    } else {
    }
    %c0 = arith.constant 0 : index
    %c0_1 = arith.constant 0 : index
    %3 = vector.load %arg10[%c0, %c0_1] : memref<1x32xf32, #tpu.memory_space<vmem>>, vector<1x32xf32>
    %c0_2 = arith.constant 0 : index
    %c0_3 = arith.constant 0 : index
    %4 = vector.load %arg11[%c0_2, %c0_3] : memref<1x32xf32, #tpu.memory_space<vmem>>, vector<1x32xf32>
    %c0_4 = arith.constant 0 : index
    %c0_5 = arith.constant 0 : index
    %5 = vector.load %arg12[%c0_4, %c0_5] : memref<1x1xi32, #tpu.memory_space<vmem>>, vector<1x1xi32>
    %6 = tpu.iota {dimensions = array<i32: 1>} : vector<1x24xi32>
    %7 = vector.broadcast %5 : vector<1x1xi32> to vector<1x24xi32>
    %8 = arith.cmpi eq, %6, %7 : vector<1x24xi32>
    %9 = arith.extui %8 : vector<1x24xi1> to vector<1x24xi32>
    %10 = arith.sitofp %9 : vector<1x24xi32> to vector<1x24xf32>
    %c0_6 = arith.constant 0 : index
    %c0_7 = arith.constant 0 : index
    %11 = vector.load %arg3[%c0_6, %c0_7] : memref<24x128xf32, #tpu.memory_space<vmem>>, vector<24x128xf32>
    %cst = arith.constant dense<0.000000e+00> : vector<1x128xf32>
    %12 = tpu.matmul %10, %11, %cst {dimension_numbers = #tpu.dot_dimension_numbers<[1], [0], [0], [1], [0, 0, 1, 1], [], []>} : vector<1x24xf32>, vector<24x128xf32>, vector<1x128xf32> -> vector<1x128xf32>
    %c0_8 = arith.constant 0 : index
    %c0_9 = arith.constant 0 : index
    %13 = vector.load %arg4[%c0_8, %c0_9] : memref<32x128xf32, #tpu.memory_space<vmem>>, vector<32x128xf32>
    %cst_10 = arith.constant dense<0.000000e+00> : vector<1x128xf32>
    %14 = tpu.matmul %3, %13, %cst_10 {dimension_numbers = #tpu.dot_dimension_numbers<[1], [0], [0], [1], [0, 0, 1, 1], [], []>} : vector<1x32xf32>, vector<32x128xf32>, vector<1x128xf32> -> vector<1x128xf32>
    %15 = arith.addf %12, %14 : vector<1x128xf32>
    %16 = vector.extract_strided_slice %15 {offsets = [0, 0], sizes = [1, 32], strides = [1, 1]} : vector<1x128xf32> to vector<1x32xf32>
    %17 = arith.negf %16 : vector<1x32xf32>
    %18 = math.exp %17 : vector<1x32xf32>
    %cst_11 = arith.constant 1.000000e+00 : f32
    %19 = vector.broadcast %cst_11 : f32 to vector<1x32xf32>
    %20 = arith.addf %19, %18 : vector<1x32xf32>
    %21 = arith.divf %19, %20 : vector<1x32xf32>
    %22 = vector.extract_strided_slice %15 {offsets = [0, 32], sizes = [1, 32], strides = [1, 1]} : vector<1x128xf32> to vector<1x32xf32>
    %23 = arith.negf %22 : vector<1x32xf32>
    %24 = math.exp %23 : vector<1x32xf32>
    %cst_12 = arith.constant 1.000000e+00 : f32
    %25 = vector.broadcast %cst_12 : f32 to vector<1x32xf32>
    %26 = arith.addf %25, %24 : vector<1x32xf32>
    %27 = arith.divf %25, %26 : vector<1x32xf32>
    %28 = vector.extract_strided_slice %15 {offsets = [0, 64], sizes = [1, 32], strides = [1, 1]} : vector<1x128xf32> to vector<1x32xf32>
    %29 = math.tanh %28 : vector<1x32xf32>
    %30 = vector.extract_strided_slice %15 {offsets = [0, 96], sizes = [1, 32], strides = [1, 1]} : vector<1x128xf32> to vector<1x32xf32>
    %31 = arith.negf %30 : vector<1x32xf32>
    %32 = math.exp %31 : vector<1x32xf32>
    %cst_13 = arith.constant 1.000000e+00 : f32
    %33 = vector.broadcast %cst_13 : f32 to vector<1x32xf32>
    %34 = arith.addf %33, %32 : vector<1x32xf32>
    %35 = arith.divf %33, %34 : vector<1x32xf32>
    %36 = arith.mulf %27, %4 : vector<1x32xf32>
    %37 = arith.mulf %21, %29 : vector<1x32xf32>
    %38 = arith.addf %36, %37 : vector<1x32xf32>
    %39 = math.tanh %38 : vector<1x32xf32>
    %40 = arith.mulf %35, %39 : vector<1x32xf32>
    %c0_14 = arith.constant 0 : index
    %c0_15 = arith.constant 0 : index
    %41 = vector.load %arg10[%c0_14, %c0_15] : memref<1x32xf32, #tpu.memory_space<vmem>>, vector<1x32xf32>
    tpu.vector_store %arg10[%c0_14, %c0_15], %40 {strides = array<i32>} : memref<1x32xf32, #tpu.memory_space<vmem>>, vector<1x32xf32>,
    %c0_16 = arith.constant 0 : index
    %c0_17 = arith.constant 0 : index
    %42 = vector.load %arg11[%c0_16, %c0_17] : memref<1x32xf32, #tpu.memory_space<vmem>>, vector<1x32xf32>
    tpu.vector_store %arg11[%c0_16, %c0_17], %38 {strides = array<i32>} : memref<1x32xf32, #tpu.memory_space<vmem>>, vector<1x32xf32>,
    %c0_18 = arith.constant 0 : index
    %c0_19 = arith.constant 0 : index
    %c0_20 = arith.constant 0 : index
    %43 = vector.load %arg5[%c0_18, %c0_19, %c0_20] : memref<1x32x128xf32, #tpu.memory_space<vmem>>, vector<1x32x128xf32>
    %44 = vector.shape_cast %43 : vector<1x32x128xf32> to vector<32x128xf32>
    %cst_21 = arith.constant dense<0.000000e+00> : vector<1x128xf32>
    %45 = tpu.matmul %40, %44, %cst_21 {dimension_numbers = #tpu.dot_dimension_numbers<[1], [0], [0], [1], [0, 0, 1, 1], [], []>} : vector<1x32xf32>, vector<32x128xf32>, vector<1x128xf32> -> vector<1x128xf32>
    %c0_22 = arith.constant 0 : index
    %c0_23 = arith.constant 0 : index
    %c0_24 = arith.constant 0 : index
    %46 = vector.load %arg6[%c0_22, %c0_23, %c0_24] : memref<1x1x128xf32, #tpu.memory_space<vmem>>, vector<1x1x128xf32>
    %47 = vector.shape_cast %46 : vector<1x1x128xf32> to vector<1x128xf32>
    %48 = arith.addf %45, %47 : vector<1x128xf32>
    %c0_25 = arith.constant 0 : index
    %c0_26 = arith.constant 0 : index
    %c0_27 = arith.constant 0 : index
    %49 = vector.load %arg8[%c0_25, %c0_26, %c0_27] : memref<1x1x128xf32, #tpu.memory_space<vmem>>, vector<1x1x128xf32>
    %50 = vector.shape_cast %49 : vector<1x1x128xf32> to vector<1x128xf32>
    %51 = vector.shape_cast %48 : vector<1x128xf32> to vector<1x1x128xf32>
    tpu.vector_store %arg8[%c0_25, %c0_26, %c0_27], %51 {strides = array<i32>} : memref<1x1x128xf32, #tpu.memory_space<vmem>>, vector<1x1x128xf32>,
    %c0_28 = arith.constant 0 : index
    %c0_29 = arith.constant 0 : index
    %c0_30 = arith.constant 0 : index
    %52 = vector.load %arg7[%c0_28, %c0_29, %c0_30] : memref<1x1x128xf32, #tpu.memory_space<vmem>>, vector<1x1x128xf32>
    %53 = vector.shape_cast %52 : vector<1x1x128xf32> to vector<1x128xf32>
    %54 = arith.addf %48, %53 : vector<1x128xf32>
    %cst_31 = arith.constant dense<0xFF800000> : vector<1xf32>
    %55 = vector.multi_reduction <maximumf>, %54, %cst_31 [1] : vector<1x128xf32> to vector<1xf32>
    %56 = vector.shape_cast %55 : vector<1xf32> to vector<1x1xf32>
    %57 = tpu.iota {dimensions = array<i32: 1>} : vector<1x128xi32>
    %58 = arith.sitofp %57 : vector<1x128xi32> to vector<1x128xf32>
    %59 = vector.broadcast %56 : vector<1x1xf32> to vector<1x128xf32>
    %60 = arith.cmpf oge, %54, %59 : vector<1x128xf32>
    %cst_32 = arith.constant 1.280000e+02 : f32
    %61 = vector.broadcast %cst_32 : f32 to vector<1x128xf32>
    %62 = arith.select %60, %58, %61 : vector<1x128xi1>, vector<1x128xf32>
    %cst_33 = arith.constant dense<0x7F800000> : vector<1xf32>
    %63 = vector.multi_reduction <minimumf>, %62, %cst_33 [1] : vector<1x128xf32> to vector<1xf32>
    %64 = vector.shape_cast %63 : vector<1xf32> to vector<1x1xf32>
    %65 = arith.fptosi %64 : vector<1x1xf32> to vector<1x1xi32>
    %66 = vector.shape_cast %65 : vector<1x1xi32> to vector<1x1xi32>
    %67 = vector.broadcast %66 : vector<1x1xi32> to vector<1x128xi32>
    %c0_34 = arith.constant 0 : index
    %c0_35 = arith.constant 0 : index
    %c0_36 = arith.constant 0 : index
    %68 = vector.load %arg9[%c0_34, %c0_35, %c0_36] : memref<1x1x128xi32, #tpu.memory_space<vmem>>, vector<1x1x128xi32>
    %69 = vector.shape_cast %68 : vector<1x1x128xi32> to vector<1x128xi32>
    %70 = vector.shape_cast %67 : vector<1x128xi32> to vector<1x1x128xi32>
    tpu.vector_store %arg9[%c0_34, %c0_35, %c0_36], %70 {strides = array<i32>} : memref<1x1x128xi32, #tpu.memory_space<vmem>>, vector<1x1x128xi32>,
    %71 = arith.index_cast %arg0 : i32 to index
    %72 = memref.load %arg2[%71] : memref<40xi32, #tpu.memory_space<smem>>
    %73 = vector.broadcast %72 : i32 to vector<1x1xi32>
    %74 = arith.addi %65, %73 : vector<1x1xi32>
    %c0_37 = arith.constant 0 : index
    %c0_38 = arith.constant 0 : index
    %75 = vector.load %arg12[%c0_37, %c0_38] : memref<1x1xi32, #tpu.memory_space<vmem>>, vector<1x1xi32>
    tpu.vector_store %arg12[%c0_37, %c0_38], %74 {strides = array<i32>} : memref<1x1xi32, #tpu.memory_space<vmem>>, vector<1x1xi32>,
    return
  }
  func.func @transform_0(%arg0: i32, %arg1: memref<40xi32, #tpu.memory_space<smem>>, %arg2: memref<40xi32, #tpu.memory_space<smem>>) -> (i32, i32) {
    %c0_i32 = arith.constant 0 : i32
    %c0_i32_0 = arith.constant 0 : i32
    %c0_i32_1 = arith.constant 0 : i32
    return %c0_i32, %c0_i32_0 : i32, i32
  }
  func.func @transform_1(%arg0: i32, %arg1: memref<40xi32, #tpu.memory_space<smem>>, %arg2: memref<40xi32, #tpu.memory_space<smem>>) -> (i32, i32) {
    %c0_i32 = arith.constant 0 : i32
    %c0_i32_0 = arith.constant 0 : i32
    %c0_i32_1 = arith.constant 0 : i32
    return %c0_i32, %c0_i32_0 : i32, i32
  }
  func.func @transform_2(%arg0: i32, %arg1: memref<40xi32, #tpu.memory_space<smem>>, %arg2: memref<40xi32, #tpu.memory_space<smem>>) -> (i32, i32, i32) {
    %0 = arith.index_cast %arg0 : i32 to index
    %1 = memref.load %arg1[%0] : memref<40xi32, #tpu.memory_space<smem>>
    %c0_i32 = arith.constant 0 : i32
    %c0_i32_0 = arith.constant 0 : i32
    %c0_i32_1 = arith.constant 0 : i32
    return %1, %c0_i32, %c0_i32_0 : i32, i32, i32
  }
  func.func @transform_3(%arg0: i32, %arg1: memref<40xi32, #tpu.memory_space<smem>>, %arg2: memref<40xi32, #tpu.memory_space<smem>>) -> (i32, i32, i32) {
    %0 = arith.index_cast %arg0 : i32 to index
    %1 = memref.load %arg1[%0] : memref<40xi32, #tpu.memory_space<smem>>
    %c0_i32 = arith.constant 0 : i32
    %c0_i32_0 = arith.constant 0 : i32
    %c0_i32_1 = arith.constant 0 : i32
    return %1, %c0_i32, %c0_i32_0 : i32, i32, i32
  }
  func.func @transform_4(%arg0: i32, %arg1: memref<40xi32, #tpu.memory_space<smem>>, %arg2: memref<40xi32, #tpu.memory_space<smem>>) -> (i32, i32, i32) {
    %c0_i32 = arith.constant 0 : i32
    %c0_i32_0 = arith.constant 0 : i32
    %c0_i32_1 = arith.constant 0 : i32
    return %arg0, %c0_i32, %c0_i32_0 : i32, i32, i32
  }
  func.func @transform_5(%arg0: i32, %arg1: memref<40xi32, #tpu.memory_space<smem>>, %arg2: memref<40xi32, #tpu.memory_space<smem>>) -> (i32, i32, i32) {
    %c0_i32 = arith.constant 0 : i32
    %c0_i32_0 = arith.constant 0 : i32
    %c0_i32_1 = arith.constant 0 : i32
    return %arg0, %c0_i32, %c0_i32_0 : i32, i32, i32
  }
  func.func @transform_6(%arg0: i32, %arg1: memref<40xi32, #tpu.memory_space<smem>>, %arg2: memref<40xi32, #tpu.memory_space<smem>>) -> (i32, i32, i32) {
    %c0_i32 = arith.constant 0 : i32
    %c0_i32_0 = arith.constant 0 : i32
    %c0_i32_1 = arith.constant 0 : i32
    return %arg0, %c0_i32, %c0_i32_0 : i32, i32, i32
  }
}

</mosaic_0001>

<llo_original>
// kernel: tpu_custom_call.1
$region0: #{tpu_custom_call.1}
  #allocation0 [shape = 'u32[]', space=smem, size = 0x4, offset = 0x4, fixed_abs, tag = 'smem constant byte address 0x4 - core index']
  #allocation1 [shape = 'u32[144,128]{1,0:T(1,128)}', space=vmem, size = 0x12000, scoped, tag = 'internal scratch']
  #allocation2 [shape = 'f32[1,32]{1,0:T(1,128)}', space=vmem, size = 0x200, scoped, tag = 'scratch operand']
  #allocation3 [shape = 'f32[1,32]{1,0:T(1,128)}', space=vmem, size = 0x200, scoped, tag = 'scratch operand']
  #allocation4 [shape = 's32[1,1]{1,0:T(1,128)}', space=vmem, size = 0x200, scoped, tag = 'scratch operand']
  #allocation5 [shape = 's32[1]{0}', space=sflag, size = 0x4, scoped, tag = 'scoped memory for tpu_custom_call.1']
  #allocation6 [shape = 'u8[512]{0}', space=smem, size = 0x200, scoped, tag = 'prefetched SMEM operand 0']
  #allocation7 [shape = 'u8[512]{0}', space=smem, size = 0x200, scoped, tag = 'prefetched SMEM operand 1']
  %s0 = inlined_call_operand.hbm [shape: s32[40], index: 0, kind: input, shape index: {}]
  %s1 = inlined_call_operand.vmem [shape: s32[40], index: 1, kind: input, shape index: {}]
  %s2 = inlined_call_operand.hbm [shape: f32[24,128], index: 2, kind: input, shape index: {}]
  %s3 = inlined_call_operand.hbm [shape: f32[32,128], index: 3, kind: input, shape index: {}]
  %s4 = inlined_call_operand.hbm [shape: f32[6,32,128], index: 4, kind: input, shape index: {}]
  %s5 = inlined_call_operand.vmem [shape: f32[6,1,128], index: 5, kind: input, shape index: {}]
  %s6 = inlined_call_operand.hbm [shape: f32[40,1,128], index: 6, kind: input, shape index: {}]
  %s7 = inlined_call_operand.hbm [shape: f32[40,1,128], index: 7, kind: output, shape index: {0}]
  %s8 = inlined_call_operand.hbm [shape: s32[40,1,128], index: 8, kind: output, shape index: {1}]
  %9 = xla_tuple %s7, %s8
  %s10 = sld [smem:[#allocation0]]
  $region81: #{tpu_custom_call.1} parent=0
    _
  %s12 = ssub.s32 1, %s10
  %s13 = scalar_select 0, %s12, %s10
  %15 = dma.hbm_to_smem %s0, 16, [#allocation6], [#allocation5]
  %s16 = sshll.u32 %s1, 4
  %s17 = int_to_ptr.vmem [resolvable:$true] %s16
  %19 = dma.vmem_to_smem %s17, 16, [#allocation7], [#allocation5]
  %20 = dma.done [#allocation5], 32
  %21 = sfence
  $region1: #{tpu_custom_call.1} parent=0
    #allocation8 [shape = 'u8[12288]{0}', space=vmem, size = 0x3000, scoped, tag = 'input window, operand 2, single buffered']
    #allocation9 [shape = 's32[2]{0}', space=sflag, size = 0x8, scoped, tag = 'scoped memory for tpu_custom_call.1']
    #allocation10 [shape = 's32[2]{0}', space=sflag, size = 0x8, scoped, tag = 'scoped memory for tpu_custom_call.1']
    #allocation11 [shape = 'u8[16384]{0}', space=vmem, size = 0x4000, scoped, tag = 'input window, operand 3, single buffered']
    #allocation12 [shape = 's32[1]{0}', space=sflag, size = 0x4, scoped, tag = 'scoped memory for tpu_custom_call.1']
    #allocation13 [shape = 'u8[32768]{0}', space=vmem, size = 0x8000, scoped, tag = 'input window, operand 4']
    #allocation14 [shape = 'u8[1024]{0}', space=vmem, size = 0x400, scoped, tag = 'input window, operand 6']
    #allocation15 [shape = 'u8[1024]{0}', space=vmem, size = 0x400, scoped, tag = 'output window, operand 0']
    #allocation16 [shape = 'u8[1024]{0}', space=vmem, size = 0x400, scoped, tag = 'output window, operand 1']
    #allocation17 [shape = 's32[2]{0}', space=sflag, size = 0x8, scoped, tag = 'scoped memory for tpu_custom_call.1']
    %22 = vsyncpa [#allocation9], 0
    %23 = vsyncpa [#allocation12], 0
    %24 = vsyncpa [#allocation10], 0
    %s25 = scalar_lea.sflag [#allocation10], 1
    %26 = vsyncpa %s25, 0
    %27 = vsyncpa [#allocation17], 0
    %s28 = scalar_lea.sflag [#allocation17], 1
    %29 = vsyncpa %s28, 0
    loop: start=0, step=1, limit=42
    $region2: #{tpu_custom_call.1} parent=1 // loop_pre_header
      _
    $region3: #{tpu_custom_call.1} parent=1 // loop_header
      %s31 = sphi 0, %s35
      %p32 = scmp.ge.s32.totalorder %s31, 42
      %s39 = sphi 0, %s39
      %s41 = sphi 0, %s39
      %s42 = sphi 0, %s41
      %s56 = sphi 0, %s42
      %s60 = sphi 0, %s60
      %s62 = sphi 0, %s60
      %s63 = sphi 0, %s62
      %s77 = sphi 0, %s63
      %s85 = sphi 0, %s87
      %s88 = sphi 0, %s85
      %s89 = sphi 0, %s88
      %s105 = sphi 0, %s89
      %s113 = sphi 0, %s115
      %s116 = sphi 0, %s113
      %s117 = sphi 0, %s116
      %s133 = sphi 0, %s117
      %s139 = sphi 0, %s141
      %s142 = sphi 0, %s139
      %s143 = sphi 0, %s142
      %s159 = sphi 0, %s143
      %s165 = sphi 0, %s167
      %s168 = sphi 0, %s165
      %s169 = sphi 0, %s168
      %s185 = sphi 0, %s169
      %s191 = sphi 0, %s193
      %s194 = sphi 0, %s191
      %s195 = sphi 0, %s194
      %s211 = sphi 0, %s195
    $region4: #{tpu_custom_call.1} parent=1 // loop_header_branch
      %34 = sbr.rel (%p32) target = $region8
    $region5: #{tpu_custom_call.1} parent=1 // loop_body
      %s36 = ssub.s32 %s31, 1
      %s37 = ssub.s32 %s31, 2
      %s38 = sadd.s32 %s31, 1
      %s40 = sadd.s32 %s39, 1
      %p43 = scmp.eq.s32.totalorder %s31, 39
      %p44 = scmp.ne.s32.totalorder %s39, %s41
      %p45 = scmp.eq.s32.totalorder %s31, 0
      %p46 = por %p44, %p45
      %p47 = scmp.ne.s32.totalorder %s39, %s41
      %p48 = scmp.eq.s32.totalorder %s36, 39
      %p49 = por %p47, %p48
      %p50 = scmp.ne.s32.totalorder %s41, %s42
      %p51 = scmp.eq.s32.totalorder %s36, 0
      %p52 = por %p50, %p51
      %p53 = scmp.ne.s32.totalorder %s41, %s42
      %p54 = scmp.eq.s32.totalorder %s37, 39
      %p55 = por %p53, %p54
      %p57 = scmp.ne.s32.totalorder %s42, %s56
      %p58 = scmp.eq.s32.totalorder %s37, 0
      %p59 = por %p57, %p58
      %s61 = sadd.s32 %s60, 1
      %p64 = scmp.eq.s32.totalorder %s31, 39
      %p65 = scmp.ne.s32.totalorder %s60, %s62
      %p66 = scmp.eq.s32.totalorder %s31, 0
      %p67 = por %p65, %p66
      %p68 = scmp.ne.s32.totalorder %s60, %s62
      %p69 = scmp.eq.s32.totalorder %s36, 39
      %p70 = por %p68, %p69
      %p71 = scmp.ne.s32.totalorder %s62, %s63
      %p72 = scmp.eq.s32.totalorder %s36, 0
      %p73 = por %p71, %p72
      %p74 = scmp.ne.s32.totalorder %s62, %s63
      %p75 = scmp.eq.s32.totalorder %s37, 39
      %p76 = por %p74, %p75
      %p78 = scmp.ne.s32.totalorder %s63, %s77
      %p79 = scmp.eq.s32.totalorder %s37, 0
      %p80 = por %p78, %p79
      %s81 = sld [smem:[#allocation6 + %s31]]
      %s82 = sld [smem:[#allocation6 + %s38]]
      %s83 = ssub.s32 %s81, %s82
      %p84 = scmp.eq.s32.totalorder %s83, 0
      %s86 = sadd.s32 %s85, 1
      %s87 = scalar_select %p84, %s85, %s86
      %p90 = pneg %p84
      %p91 = scmp.eq.s32.totalorder %s31, 39
      %p92 = por %p90, %p91
      %p93 = scmp.ne.s32.totalorder %s85, %s88
      %p94 = scmp.eq.s32.totalorder %s31, 0
      %p95 = por %p93, %p94
      %p96 = scmp.ne.s32.totalorder %s85, %s88
      %p97 = scmp.eq.s32.totalorder %s36, 39
      %p98 = por %p96, %p97
      %p99 = scmp.ne.s32.totalorder %s88, %s89
      %p100 = scmp.eq.s32.totalorder %s36, 0
      %p101 = por %p99, %p100
      %p102 = scmp.ne.s32.totalorder %s88, %s89
      %p103 = scmp.eq.s32.totalorder %s37, 39
      %p104 = por %p102, %p103
      %p106 = scmp.ne.s32.totalorder %s89, %s105
      %p107 = scmp.eq.s32.totalorder %s37, 0
      %p108 = por %p106, %p107
      %s109 = sld [smem:[#allocation6 + %s31]]
      %s110 = sld [smem:[#allocation6 + %s38]]
      %s111 = ssub.s32 %s109, %s110
      %p112 = scmp.eq.s32.totalorder %s111, 0
      %s114 = sadd.s32 %s113, 1
      %s115 = scalar_select %p112, %s113, %s114
      %p118 = pneg %p112
      %p119 = scmp.eq.s32.totalorder %s31, 39
      %p120 = por %p118, %p119
      %p121 = scmp.ne.s32.totalorder %s113, %s116
      %p122 = scmp.eq.s32.totalorder %s31, 0
      %p123 = por %p121, %p122
      %p124 = scmp.ne.s32.totalorder %s113, %s116
      %p125 = scmp.eq.s32.totalorder %s36, 39
      %p126 = por %p124, %p125
      %p127 = scmp.ne.s32.totalorder %s116, %s117
      %p128 = scmp.eq.s32.totalorder %s36, 0
      %p129 = por %p127, %p128
      %p130 = scmp.ne.s32.totalorder %s116, %s117
      %p131 = scmp.eq.s32.totalorder %s37, 39
      %p132 = por %p130, %p131
      %p134 = scmp.ne.s32.totalorder %s117, %s133
      %p135 = scmp.eq.s32.totalorder %s37, 0
      %p136 = por %p134, %p135
      %s137 = ssub.s32 %s31, %s38
      %p138 = scmp.eq.s32.totalorder %s137, 0
      %s140 = sadd.s32 %s139, 1
      %s141 = scalar_select %p138, %s139, %s140
      %p144 = pneg %p138
      %p145 = scmp.eq.s32.totalorder %s31, 39
      %p146 = por %p144, %p145
      %p147 = scmp.ne.s32.totalorder %s139, %s142
      %p148 = scmp.eq.s32.totalorder %s31, 0
      %p149 = por %p147, %p148
      %p150 = scmp.ne.s32.totalorder %s139, %s142
      %p151 = scmp.eq.s32.totalorder %s36, 39
      %p152 = por %p150, %p151
      %p153 = scmp.ne.s32.totalorder %s142, %s143
      %p154 = scmp.eq.s32.totalorder %s36, 0
      %p155 = por %p153, %p154
      %p156 = scmp.ne.s32.totalorder %s142, %s143
      %p157 = scmp.eq.s32.totalorder %s37, 39
      %p158 = por %p156, %p157
      %p160 = scmp.ne.s32.totalorder %s143, %s159
      %p161 = scmp.eq.s32.totalorder %s37, 0
      %p162 = por %p160, %p161
      %s163 = ssub.s32 %s31, %s38
      %p164 = scmp.eq.s32.totalorder %s163, 0
      %s166 = sadd.s32 %s165, 1
      %s167 = scalar_select %p164, %s165, %s166
      %p170 = pneg %p164
      %p171 = scmp.eq.s32.totalorder %s31, 39
      %p172 = por %p170, %p171
      %p173 = scmp.ne.s32.totalorder %s165, %s168
      %p174 = scmp.eq.s32.totalorder %s31, 0
      %p175 = por %p173, %p174
      %p176 = scmp.ne.s32.totalorder %s165, %s168
      %p177 = scmp.eq.s32.totalorder %s36, 39
      %p178 = por %p176, %p177
      %p179 = scmp.ne.s32.totalorder %s168, %s169
      %p180 = scmp.eq.s32.totalorder %s36, 0
      %p181 = por %p179, %p180
      %p182 = scmp.ne.s32.totalorder %s168, %s169
      %p183 = scmp.eq.s32.totalorder %s37, 39
      %p184 = por %p182, %p183
      %p186 = scmp.ne.s32.totalorder %s169, %s185
      %p187 = scmp.eq.s32.totalorder %s37, 0
      %p188 = por %p186, %p187
      %s189 = ssub.s32 %s31, %s38
      %p190 = scmp.eq.s32.totalorder %s189, 0
      %s192 = sadd.s32 %s191, 1
      %s193 = scalar_select %p190, %s191, %s192
      %p196 = pneg %p190
      %p197 = scmp.eq.s32.totalorder %s31, 39
      %p198 = por %p196, %p197
      %p199 = scmp.ne.s32.totalorder %s191, %s194
      %p200 = scmp.eq.s32.totalorder %s31, 0
      %p201 = por %p199, %p200
      %p202 = scmp.ne.s32.totalorder %s191, %s194
      %p203 = scmp.eq.s32.totalorder %s36, 39
      %p204 = por %p202, %p203
      %p205 = scmp.ne.s32.totalorder %s194, %s195
      %p206 = scmp.eq.s32.totalorder %s36, 0
      %p207 = por %p205, %p206
      %p208 = scmp.ne.s32.totalorder %s194, %s195
      %p209 = scmp.eq.s32.totalorder %s37, 39
      %p210 = por %p208, %p209
      %p212 = scmp.ne.s32.totalorder %s195, %s211
      %p213 = scmp.eq.s32.totalorder %s37, 0
      %p214 = por %p212, %p213
      %p215 = scmp.le.s32.totalorder 1, %s31
      %p216 = scmp.lt.s32.totalorder %s31, 41
      %p217 = pnand %p215, %p216
      %p218 = pneg %p217
      // Predicated region
      $region9: #{tpu_custom_call.1} parent=5 // pred_check
        _
      $region10: #{tpu_custom_call.1} parent=5 // pred_check_branch
        %220 = sbr.rel (%p217) target = $region12
      $region11: #{tpu_custom_call.1} parent=5 // pred_region
        %s221 = ssub.s32 %s31, 1
        // Predicated region
        $region13: #{tpu_custom_call.1} parent=11 // pred_check
          %p222 = pneg %p52
        $region14: #{tpu_custom_call.1} parent=11 // pred_check_branch
          %224 = sbr.rel (%p222) target = $region16
        $region15: #{tpu_custom_call.1} parent=11 // pred_region
          %s226 = ssub.s32 384, 384
          %227 = vsyncadd [#allocation9], %s226
          %s228 = sshll.u32 [#allocation8], 4
          %s229 = int_to_ptr.vmem [resolvable:$true] %s228
          %234 = dma.hbm_to_vmem [thread:$0]  %s2, 384, %s229, [#allocation9], 128, 128, 8
        $region16: #{tpu_custom_call.1} parent=11 // pred_fallthru
          _
        // Predicated region
        $region17: #{tpu_custom_call.1} parent=11 // pred_check
          %p235 = pneg %p73
        $region18: #{tpu_custom_call.1} parent=11 // pred_check_branch
          %237 = sbr.rel (%p235) target = $region20
        $region19: #{tpu_custom_call.1} parent=11 // pred_region
          %s239 = ssub.s32 512, 512
          %240 = vsyncadd [#allocation12], %s239
          %s241 = sshll.u32 [#allocation11], 4
          %s242 = int_to_ptr.vmem [resolvable:$true] %s241
          %247 = dma.hbm_to_vmem [thread:$0]  %s3, 512, %s242, [#allocation12], 128, 128, 8
        $region20: #{tpu_custom_call.1} parent=11 // pred_fallthru
          _
      $region12: #{tpu_custom_call.1} parent=5 // pred_fallthru
        _
      %p248 = scmp.lt.s32.totalorder %s31, 40
      // Predicated region
      $region21: #{tpu_custom_call.1} parent=5 // pred_check
        %p249 = pneg %p248
      $region22: #{tpu_custom_call.1} parent=5 // pred_check_branch
        %251 = sbr.rel (%p249) target = $region24
      $region23: #{tpu_custom_call.1} parent=5 // pred_region
        // Predicated region
        $region25: #{tpu_custom_call.1} parent=23 // pred_check
          %p252 = pneg %p95
        $region26: #{tpu_custom_call.1} parent=23 // pred_check_branch
          %254 = sbr.rel (%p252) target = $region28
        $region27: #{tpu_custom_call.1} parent=23 // pred_region
          %s255 = sand.u32 %s31, 1
          %s256 = scalar_lea.sflag [#allocation9], %s255
          %s257 = sand.u32 %s85, 1
          %s258 = smul.addr %s257, 32
          %s259 = scalar_lea.vmem [#allocation13], %s258
          %s260 = sld [smem:[#allocation6 + %s31]]
          %s262 = ssub.s32 512, 512
          %263 = vsyncadd %s256, %s262
          %s264 = smul.addr %s260, 4
          %s265 = smul.addr %s264, 128
          %s266 = scalar_lea.hbm %s4, %s265
          %s267 = sshll.u32 %s259, 4
          %s268 = int_to_ptr.vmem [resolvable:$true] %s267
          %273 = dma.hbm_to_vmem [thread:$0]  %s266, 512, %s268, %s256, 128, 128, 8
        $region28: #{tpu_custom_call.1} parent=23 // pred_fallthru
          _
        // Predicated region
        $region29: #{tpu_custom_call.1} parent=23 // pred_check
          %p274 = pneg %p123
        $region30: #{tpu_custom_call.1} parent=23 // pred_check_branch
          %276 = sbr.rel (%p274) target = $region32
        $region31: #{tpu_custom_call.1} parent=23 // pred_region
          %s277 = sld [smem:[#allocation6 + %s31]]
          %p278 = scmp.lt.s32.totalorder %s277, 5
          %s279 = scalar_select %p278, %s277, 5
          %s280 = scalar_lea.vmem %s5, %s279
          %s281 = sld [smem:[#allocation6 + %s31]]
        $region32: #{tpu_custom_call.1} parent=23 // pred_fallthru
          _
        // Predicated region
        $region33: #{tpu_custom_call.1} parent=23 // pred_check
          %p282 = pneg %p149
        $region34: #{tpu_custom_call.1} parent=23 // pred_check_branch
          %284 = sbr.rel (%p282) target = $region36
        $region35: #{tpu_custom_call.1} parent=23 // pred_region
          %s285 = sand.u32 %s31, 1
          %s286 = scalar_lea.sflag [#allocation9], %s285
          %s287 = sand.u32 %s139, 1
          %s288 = scalar_lea.vmem [#allocation14], %s287
          %s290 = ssub.s32 16, 16
          %291 = vsyncadd %s286, %s290
          %s292 = smul.addr %s31, 16
          %s293 = scalar_lea.hbm %s6, %s292
          %s295 = sshll.u32 %s288, 4
          %s296 = int_to_ptr.vmem [resolvable:$true] %s295
          %298 = dma.hbm_to_vmem [thread:$0]  %s293, 16, %s296, %s286
        $region36: #{tpu_custom_call.1} parent=23 // pred_fallthru
          _
      $region24: #{tpu_custom_call.1} parent=5 // pred_fallthru
        _
      %p299 = scmp.le.s32.totalorder 1, %s31
      %p300 = scmp.lt.s32.totalorder %s31, 41
      %p301 = pnand %p299, %p300
      %p302 = pneg %p301
      // Predicated region
      $region37: #{tpu_custom_call.1} parent=5 // pred_check
        _
      $region38: #{tpu_custom_call.1} parent=5 // pred_check_branch
        %304 = sbr.rel (%p301) target = $region40
      $region39: #{tpu_custom_call.1} parent=5 // pred_region
        %s305 = ssub.s32 %s31, 1
        // Predicated region
        $region41: #{tpu_custom_call.1} parent=39 // pred_check
          %p306 = pneg %p52
        $region42: #{tpu_custom_call.1} parent=39 // pred_check_branch
          %308 = sbr.rel (%p306) target = $region44
        $region43: #{tpu_custom_call.1} parent=39 // pred_region
          %309 = dma.done [#allocation9], 384
        $region44: #{tpu_custom_call.1} parent=39 // pred_fallthru
          _
        // Predicated region
        $region45: #{tpu_custom_call.1} parent=39 // pred_check
          %p310 = pneg %p73
        $region46: #{tpu_custom_call.1} parent=39 // pred_check_branch
          %312 = sbr.rel (%p310) target = $region48
        $region47: #{tpu_custom_call.1} parent=39 // pred_region
          %313 = dma.done [#allocation12], 512
        $region48: #{tpu_custom_call.1} parent=39 // pred_fallthru
          _
        %s314 = sand.u32 %s36, 1
        %s315 = scalar_lea.sflag [#allocation9], %s314
        %s316 = sand.u32 %s88, 1
        %s317 = smul.addr %s316, 32
        %s318 = scalar_lea.vmem [#allocation13], %s317
        // Predicated region
        $region49: #{tpu_custom_call.1} parent=39 // pred_check
          %p319 = pneg %p101
        $region50: #{tpu_custom_call.1} parent=39 // pred_check_branch
          %321 = sbr.rel (%p319) target = $region52
        $region51: #{tpu_custom_call.1} parent=39 // pred_region
          %322 = dma.done %s315, 512
        $region52: #{tpu_custom_call.1} parent=39 // pred_fallthru
          _
        %s323 = sand.u32 %s36, 1
        %s324 = scalar_lea.sflag [#allocation9], %s323
        %s325 = sand.u32 %s142, 1
        %s326 = scalar_lea.vmem [#allocation14], %s325
        // Predicated region
        $region53: #{tpu_custom_call.1} parent=39 // pred_check
          %p327 = pneg %p155
        $region54: #{tpu_custom_call.1} parent=39 // pred_check_branch
          %329 = sbr.rel (%p327) target = $region56
        $region55: #{tpu_custom_call.1} parent=39 // pred_region
          %330 = dma.done %s324, 16
        $region56: #{tpu_custom_call.1} parent=39 // pred_fallthru
          _
        %p331 = pneg %p52
        %p332 = pneg %p49
        %p333 = pneg %p73
        %p334 = pneg %p70
        %s335 = sand.u32 %s36, 1
        %s336 = scalar_lea.sflag [#allocation9], %s335
        %s337 = sand.u32 %s88, 1
        %s338 = smul.addr %s337, 32
        %s339 = scalar_lea.vmem [#allocation13], %s338
        %p340 = pneg %p101
        %p341 = pneg %p98
        %s342 = sld [smem:[#allocation6 + %s36]]
        %p343 = scmp.lt.s32.totalorder %s342, 5
        %s344 = scalar_select %p343, %s342, 5
        %s345 = scalar_lea.vmem %s5, %s344
        %p346 = pneg %p129
        %p347 = pneg %p126
        %s348 = sand.u32 %s36, 1
        %s349 = scalar_lea.sflag [#allocation9], %s348
        %s350 = sand.u32 %s142, 1
        %s351 = scalar_lea.vmem [#allocation14], %s350
        %p352 = pneg %p155
        %p353 = pneg %p152
        %p354 = pneg %p181
        %p355 = pneg %p178
        %s356 = sand.u32 %s168, 1
        %s357 = scalar_lea.sflag [#allocation10], %s356
        %s358 = sand.u32 %s168, 1
        %s359 = scalar_lea.vmem [#allocation15], %s358
        %p360 = pneg %p207
        %p361 = pneg %p204
        %s362 = sand.u32 %s194, 1
        %s363 = scalar_lea.sflag [#allocation17], %s362
        %s364 = sand.u32 %s194, 1
        %s365 = scalar_lea.vmem [#allocation16], %s364
        %s366 = sld [smem:[#allocation6 + %s36]]
        %s367 = sld [smem:[#allocation6 + %s36]]
        %p368 = scmp.lt.s32.totalorder %s367, 5
        %s369 = scalar_select %p368, %s367, 5
        %s370 = scalar_lea.vmem %s5, %s369
        %s371 = sld [smem:[#allocation6 + %s36]]
        %p372 = scmp.eq.s32.totalorder %s36, 0
        // Predicated region
        $region57: #{tpu_custom_call.1} parent=39 // pred_check
          %p373 = pneg %p372
        $region58: #{tpu_custom_call.1} parent=39 // pred_check_branch
          %375 = sbr.rel (%p373) target = $region60
        $region59: #{tpu_custom_call.1} parent=39 // pred_region
          %vm376 = vcmask 253952
          %377 = vst.msk [vmem:[#allocation2] sm:$0x1] %vm376, 0.0
          %378 = vst.msk [vmem:[#allocation3] sm:$0x1] %vm376, 0.0
          %vm379 = vcmask 0
          %380 = vst.msk [vmem:[#allocation4] sm:$0x1] %vm379, 13
        $region60: #{tpu_custom_call.1} parent=39 // pred_fallthru
          _
        %v381 = vld [vmem:[#allocation2] sm:$0x1]
        %v382 = vld [vmem:[#allocation3] sm:$0x1]
        %v383 = vld [vmem:[#allocation4] sm:$0x1]
        %v384 = vlaneseq
        %v385 = vand.u32 %v384, 127
        %386 = vset.pattern.permute.xlu0 0
        %387 = vperm.xlu0 %386, %v383
        %v388 = vpop.permute.xlu0 %387
        %v389 = vlaneseq
        %v390 = vshrl.u32 %v389, 7
        %v391 = vsub.s32 0, %v390
        %v392 = vrot.slane %v388, %v391
        %vm393 = vcmp.eq.s32.totalorder %v385, %v392
        %v394 = vsel %vm393, 1, 0
        %v395 = vcvt.s32.f32 %v394
        %v396 = vld [vmem:[#allocation8] sm:$0xff]
        %v397 = vld [vmem:[#allocation8 + $0x8] sm:$0xff]
        %v398 = vld [vmem:[#allocation8 + $0x10] sm:$0xff]
        %v399 = vld [vmem:[#allocation11] sm:$0xff]
        %v400 = vld [vmem:[#allocation11 + $0x8] sm:$0xff]
        %v401 = vld [vmem:[#allocation11 + $0x10] sm:$0xff]
        %v402 = vld [vmem:[#allocation11 + $0x18] sm:$0xff]
        %vm403 = vcmask 261120
        %v405 = vsel %vm403, %v381, 0
        %407 = vmatprep.subr.mxu0 0.0
        %408 = vmatpush1.msra.mxu0 0.0
        %409 = vmatprep.subr.mxu0 0.0
        %410 = vmatpush1.msra.mxu0 0.0
        %411 = vmatprep.subr.mxu0 0.0
        %412 = vmatpush1.msra.mxu0 0.0
        %413 = vmatprep.subr.mxu0 0.0
        %414 = vmatpush1.msra.mxu0 0.0
        %415 = vmatprep.subr.mxu0 0.0
        %416 = vmatpush1.msra.mxu0 0.0
        %417 = vmatprep.subr.mxu0 0.0
        %418 = vmatpush1.msra.mxu0 0.0
        %419 = vmatprep.subr.mxu0 0.0
        %420 = vmatpush1.msra.mxu0 0.0
        %421 = vmatprep.subr.mxu0 0.0
        %422 = vmatpush1.msra.mxu0 0.0
        %423 = vmatprep.subr.mxu0 0.0
        %424 = vmatpush1.msra.mxu0 0.0
        %425 = vmatprep.subr.mxu0 0.0
        %426 = vmatpush1.msra.mxu0 0.0
        %427 = vmatprep.subr.mxu0 0.0
        %428 = vmatpush1.msra.mxu0 0.0
        %429 = vmatprep.subr.mxu0 0.0
        %430 = vmatpush1.msra.mxu0 0.0
        %431 = vmatprep.subr.mxu0 0.0
        %432 = vmatpush1.msra.mxu0 %v402
        %433 = vmatprep.subr.mxu0 0.0
        %434 = vmatpush1.msra.mxu0 %v401
        %435 = vmatprep.subr.mxu0 0.0
        %436 = vmatpush1.msra.mxu0 %v400
        %437 = vmatprep.subr.mxu0 0.0
        %438 = vmatpush1.msra.mxu0 %v399
        %439 = vmatprep.subr.mxu0 0.0
        %440 = vmatpush2.msra.mxu0 0.0
        %441 = vmatprep.subr.mxu0 0.0
        %442 = vmatpush2.msra.mxu0 0.0
        %443 = vmatprep.subr.mxu0 0.0
        %444 = vmatpush2.msra.mxu0 0.0
        %445 = vmatprep.subr.mxu0 0.0
        %446 = vmatpush2.msra.mxu0 0.0
        %447 = vmatprep.subr.mxu0 0.0
        %448 = vmatpush2.msra.mxu0 0.0
        %449 = vmatprep.subr.mxu0 0.0
        %450 = vmatpush2.msra.mxu0 0.0
        %451 = vmatprep.subr.mxu0 0.0
        %452 = vmatpush2.msra.mxu0 0.0
        %453 = vmatprep.subr.mxu0 0.0
        %454 = vmatpush2.msra.mxu0 0.0
        %455 = vmatprep.subr.mxu0 0.0
        %456 = vmatpush2.msra.mxu0 0.0
        %457 = vmatprep.subr.mxu0 0.0
        %458 = vmatpush2.msra.mxu0 0.0
        %459 = vmatprep.subr.mxu0 0.0
        %460 = vmatpush2.msra.mxu0 0.0
        %461 = vmatprep.subr.mxu0 0.0
        %462 = vmatpush2.msra.mxu0 0.0
        %463 = vmatprep.subr.mxu0 0.0
        %464 = vmatpush2.msra.mxu0 0.0
        %465 = vmatprep.subr.mxu0 0.0
        %466 = vmatpush2.msra.mxu0 0.0
        %467 = vmatprep.subr.mxu0 0.0
        %468 = vmatpush2.msra.mxu0 0.0
        %469 = vmatprep.subr.mxu0 0.0
        %470 = vmatpush2.msra.mxu0 0.0
        %471 = vmatprep.mubr.f32.mxu0 0.0
        %472 = vmatmul.mubr.f32.gmra.mxu0 %v405
        %v473 = vpop.f32.mrf.mxu0
        %v474 = vadd.f32 0.0, %v473
        %v475 = vpop.f32.mrf.mxu0
        %476 = vdwg.mxu0
        %vm477 = vcmask 195584
        %v479 = vsel %vm477, %v395, 0
        %481 = vmatprep.subr.mxu0 0.0
        %482 = vmatpush1.msra.mxu0 0.0
        %483 = vmatprep.subr.mxu0 0.0
        %484 = vmatpush1.msra.mxu0 0.0
        %485 = vmatprep.subr.mxu0 0.0
        %486 = vmatpush1.msra.mxu0 0.0
        %487 = vmatprep.subr.mxu0 0.0
        %488 = vmatpush1.msra.mxu0 0.0
        %489 = vmatprep.subr.mxu0 0.0
        %490 = vmatpush1.msra.mxu0 0.0
        %491 = vmatprep.subr.mxu0 0.0
        %492 = vmatpush1.msra.mxu0 0.0
        %493 = vmatprep.subr.mxu0 0.0
        %494 = vmatpush1.msra.mxu0 0.0
        %495 = vmatprep.subr.mxu0 0.0
        %496 = vmatpush1.msra.mxu0 0.0
        %497 = vmatprep.subr.mxu0 0.0
        %498 = vmatpush1.msra.mxu0 0.0
        %499 = vmatprep.subr.mxu0 0.0
        %500 = vmatpush1.msra.mxu0 0.0
        %501 = vmatprep.subr.mxu0 0.0
        %502 = vmatpush1.msra.mxu0 0.0
        %503 = vmatprep.subr.mxu0 0.0
        %504 = vmatpush1.msra.mxu0 0.0
        %505 = vmatprep.subr.mxu0 0.0
        %506 = vmatpush1.msra.mxu0 0.0
        %507 = vmatprep.subr.mxu0 0.0
        %508 = vmatpush1.msra.mxu0 %v398
        %509 = vmatprep.subr.mxu0 0.0
        %510 = vmatpush1.msra.mxu0 %v397
        %511 = vmatprep.subr.mxu0 0.0
        %512 = vmatpush1.msra.mxu0 %v396
        %513 = vmatprep.subr.mxu0 0.0
        %514 = vmatpush2.msra.mxu0 0.0
        %515 = vmatprep.subr.mxu0 0.0
        %516 = vmatpush2.msra.mxu0 0.0
        %517 = vmatprep.subr.mxu0 0.0
        %518 = vmatpush2.msra.mxu0 0.0
        %519 = vmatprep.subr.mxu0 0.0
        %520 = vmatpush2.msra.mxu0 0.0
        %521 = vmatprep.subr.mxu0 0.0
        %522 = vmatpush2.msra.mxu0 0.0
        %523 = vmatprep.subr.mxu0 0.0
        %524 = vmatpush2.msra.mxu0 0.0
        %525 = vmatprep.subr.mxu0 0.0
        %526 = vmatpush2.msra.mxu0 0.0
        %527 = vmatprep.subr.mxu0 0.0
        %528 = vmatpush2.msra.mxu0 0.0
        %529 = vmatprep.subr.mxu0 0.0
        %530 = vmatpush2.msra.mxu0 0.0
        %531 = vmatprep.subr.mxu0 0.0
        %532 = vmatpush2.msra.mxu0 0.0
        %533 = vmatprep.subr.mxu0 0.0
        %534 = vmatpush2.msra.mxu0 0.0
        %535 = vmatprep.subr.mxu0 0.0
        %536 = vmatpush2.msra.mxu0 0.0
        %537 = vmatprep.subr.mxu0 0.0
        %538 = vmatpush2.msra.mxu0 0.0
        %539 = vmatprep.subr.mxu0 0.0
        %540 = vmatpush2.msra.mxu0 0.0
        %541 = vmatprep.subr.mxu0 0.0
        %542 = vmatpush2.msra.mxu0 0.0
        %543 = vmatprep.subr.mxu0 0.0
        %544 = vmatpush2.msra.mxu0 0.0
        %545 = vmatprep.mubr.f32.mxu0 0.0
        %546 = vmatmul.mubr.f32.gmra.mxu0 %v479
        %v547 = vpop.f32.mrf.mxu0
        %v548 = vadd.f32 %v474, %v547
        %v549 = vpop.f32.mrf.mxu0
        %550 = vdwg.mxu0
        %v551 = vxor.u32 %v548, 2147483648
        %v552 = vmul.f32 %v551, 1.442695
        %v553 = vpow.pop %v552
        %v554 = vadd.f32 %v553, 1.0
        %v555 = vrcp.pop %v554
        %v556 = vmul.f32 1.0, %v555
        %v557 = vtanh.pop %v548
        %v559 = vlaneseq
        %v560 = vshrl.u32 %v559, 7
        %v561 = vsub.s32 0, %v560
        %v562 = vrot.slane %v382, %v561
        %563 = vrot.lane.b32.xlu0 %v562, 32
        %v564 = vpop.permute.xlu0 %563
        %v566 = vmul.f32 %v556, %v564
        %568 = vrot.lane.b32.xlu0 %v557, 64
        %v569 = vpop.permute.xlu0 %568
        %v571 = vmul.f32 %v556, %v569
        %573 = vrot.lane.b32.xlu0 %v571, 32
        %v574 = vpop.permute.xlu0 %573
        %v576 = vadd.f32 %v566, %v574
        %v577 = vtanh.pop %v576
        %579 = vrot.lane.b32.xlu0 %v577, 64
        %v580 = vpop.permute.xlu0 %579
        %v582 = vmul.f32 %v556, %v580
        %584 = vrot.lane.b32.xlu0 %v582, 32
        %v585 = vpop.permute.xlu0 %584
        %vm587 = vcmask 253952
        %588 = vst.msk [vmem:[#allocation2] sm:$0x1] %vm587, %v585
        %590 = vrot.lane.b32.xlu0 %v576, 96
        %v591 = vpop.permute.xlu0 %590
        %593 = vst.msk [vmem:[#allocation3] sm:$0x1] %vm587, %v591
        %v594 = vld [vmem:[%s318] sm:$0xff]
        %v595 = vld [vmem:[%s318 + $0x8] sm:$0xff]
        %v596 = vld [vmem:[%s318 + $0x10] sm:$0xff]
        %v597 = vld [vmem:[%s318 + $0x18] sm:$0xff]
        %v598 = vld [vmem:[%s370] sm:$0x1]
        %v599 = vsel %vm403, %v585, 0
        %601 = vmatprep.subr.mxu0 0.0
        %602 = vmatpush1.msra.mxu0 0.0
        %603 = vmatprep.subr.mxu0 0.0
        %604 = vmatpush1.msra.mxu0 0.0
        %605 = vmatprep.subr.mxu0 0.0
        %606 = vmatpush1.msra.mxu0 0.0
        %607 = vmatprep.subr.mxu0 0.0
        %608 = vmatpush1.msra.mxu0 0.0
        %609 = vmatprep.subr.mxu0 0.0
        %610 = vmatpush1.msra.mxu0 0.0
        %611 = vmatprep.subr.mxu0 0.0
        %612 = vmatpush1.msra.mxu0 0.0
        %613 = vmatprep.subr.mxu0 0.0
        %614 = vmatpush1.msra.mxu0 0.0
        %615 = vmatprep.subr.mxu0 0.0
        %616 = vmatpush1.msra.mxu0 0.0
        %617 = vmatprep.subr.mxu0 0.0
        %618 = vmatpush1.msra.mxu0 0.0
        %619 = vmatprep.subr.mxu0 0.0
        %620 = vmatpush1.msra.mxu0 0.0
        %621 = vmatprep.subr.mxu0 0.0
        %622 = vmatpush1.msra.mxu0 0.0
        %623 = vmatprep.subr.mxu0 0.0
        %624 = vmatpush1.msra.mxu0 0.0
        %625 = vmatprep.subr.mxu0 0.0
        %626 = vmatpush1.msra.mxu0 %v597
        %627 = vmatprep.subr.mxu0 0.0
        %628 = vmatpush1.msra.mxu0 %v596
        %629 = vmatprep.subr.mxu0 0.0
        %630 = vmatpush1.msra.mxu0 %v595
        %631 = vmatprep.subr.mxu0 0.0
        %632 = vmatpush1.msra.mxu0 %v594
        %633 = vmatprep.subr.mxu0 0.0
        %634 = vmatpush2.msra.mxu0 0.0
        %635 = vmatprep.subr.mxu0 0.0
        %636 = vmatpush2.msra.mxu0 0.0
        %637 = vmatprep.subr.mxu0 0.0
        %638 = vmatpush2.msra.mxu0 0.0
        %639 = vmatprep.subr.mxu0 0.0
        %640 = vmatpush2.msra.mxu0 0.0
        %641 = vmatprep.subr.mxu0 0.0
        %642 = vmatpush2.msra.mxu0 0.0
        %643 = vmatprep.subr.mxu0 0.0
        %644 = vmatpush2.msra.mxu0 0.0
        %645 = vmatprep.subr.mxu0 0.0
        %646 = vmatpush2.msra.mxu0 0.0
        %647 = vmatprep.subr.mxu0 0.0
        %648 = vmatpush2.msra.mxu0 0.0
        %649 = vmatprep.subr.mxu0 0.0
        %650 = vmatpush2.msra.mxu0 0.0
        %651 = vmatprep.subr.mxu0 0.0
        %652 = vmatpush2.msra.mxu0 0.0
        %653 = vmatprep.subr.mxu0 0.0
        %654 = vmatpush2.msra.mxu0 0.0
        %655 = vmatprep.subr.mxu0 0.0
        %656 = vmatpush2.msra.mxu0 0.0
        %657 = vmatprep.subr.mxu0 0.0
        %658 = vmatpush2.msra.mxu0 0.0
        %659 = vmatprep.subr.mxu0 0.0
        %660 = vmatpush2.msra.mxu0 0.0
        %661 = vmatprep.subr.mxu0 0.0
        %662 = vmatpush2.msra.mxu0 0.0
        %663 = vmatprep.subr.mxu0 0.0
        %664 = vmatpush2.msra.mxu0 0.0
        %665 = vmatprep.mubr.f32.mxu0 0.0
        %666 = vmatmul.mubr.f32.gmra.mxu0 %v599
        %v667 = vpop.f32.mrf.mxu0
        %v668 = vadd.f32 %v598, %v667
        %v669 = vpop.f32.mrf.mxu0
        %670 = vdwg.mxu0
        %671 = vst [vmem:[%s359] sm:$0x1] %v668
        %v672 = vld [vmem:[%s326] sm:$0x1]
        %v673 = vadd.f32 %v668, %v672
        %vm674 = vcmask 1040384
        %v675 = vsel %vm674, %v673, -inf
        %676 = vmax.xlane.f32.xlu0 %v675
        %v677 = vpop.xlane.xlu0 %676
        %v678 = vcvt.s32.f32 %v385
        %vm679 = vcmp.ge.f32.partialorder %v673, %v677
        %v680 = vsel %vm679, %v678, 128.0
        %v681 = vsel %vm674, %v680, inf
        %682 = vmin.xlane.f32.xlu0 %v681
        %v683 = vpop.xlane.xlu0 %682
        %v684 = vcvt.f32.s32.to.zero.pseudo %v683
        %685 = vst [vmem:[%s365] sm:$0x1] %v684
        %s686 = sld [smem:[#allocation7 + %s36]]
        %v687 = vstv %s686
        %v688 = vadd.s32 %v684, %v687
        %vm689 = vcmask 0
        %690 = vst.msk [vmem:[#allocation4] sm:$0x1] %vm689, %v688
        %s691 = sand.u32 %s168, 1
        %s692 = scalar_lea.sflag [#allocation10], %s691
        %s693 = sand.u32 %s168, 1
        %s694 = scalar_lea.vmem [#allocation15], %s693
        %s695 = sand.u32 %s194, 1
        %s696 = scalar_lea.sflag [#allocation17], %s695
        %s697 = sand.u32 %s194, 1
        %s698 = scalar_lea.vmem [#allocation16], %s697
        // Predicated region
        $region61: #{tpu_custom_call.1} parent=39 // pred_check
          %p699 = pneg %p178
        $region62: #{tpu_custom_call.1} parent=39 // pred_check_branch
          %701 = sbr.rel (%p699) target = $region64
        $region63: #{tpu_custom_call.1} parent=39 // pred_region
          %s703 = ssub.s32 16, 16
          %704 = vsyncadd %s692, %s703
          %s705 = smul.addr %s36, 16
          %s706 = scalar_lea.hbm %s7, %s705
          %s708 = sshll.u32 %s694, 4
          %s709 = int_to_ptr.vmem [resolvable:$true] %s708
          %711 = dma.vmem_to_hbm [thread:$0]  %s709, 16, %s706, %s692
        $region64: #{tpu_custom_call.1} parent=39 // pred_fallthru
          _
        // Predicated region
        $region65: #{tpu_custom_call.1} parent=39 // pred_check
          %p712 = pneg %p204
        $region66: #{tpu_custom_call.1} parent=39 // pred_check_branch
          %714 = sbr.rel (%p712) target = $region68
        $region67: #{tpu_custom_call.1} parent=39 // pred_region
          %s716 = ssub.s32 16, 16
          %717 = vsyncadd %s696, %s716
          %s718 = smul.addr %s36, 16
          %s719 = scalar_lea.hbm %s8, %s718
          %s721 = sshll.u32 %s698, 4
          %s722 = int_to_ptr.vmem [resolvable:$true] %s721
          %724 = dma.vmem_to_hbm [thread:$0]  %s722, 16, %s719, %s696
        $region68: #{tpu_custom_call.1} parent=39 // pred_fallthru
          _
      $region40: #{tpu_custom_call.1} parent=5 // pred_fallthru
        _
      %p725 = scmp.le.s32.totalorder 2, %s31
      // Predicated region
      $region69: #{tpu_custom_call.1} parent=5 // pred_check
        %p726 = pneg %p725
      $region70: #{tpu_custom_call.1} parent=5 // pred_check_branch
        %728 = sbr.rel (%p726) target = $region72
      $region71: #{tpu_custom_call.1} parent=5 // pred_region
        %s729 = ssub.s32 %s31, 2
        // Predicated region
        $region73: #{tpu_custom_call.1} parent=71 // pred_check
          %p730 = pneg %p184
        $region74: #{tpu_custom_call.1} parent=71 // pred_check_branch
          %732 = sbr.rel (%p730) target = $region76
        $region75: #{tpu_custom_call.1} parent=71 // pred_region
          %s733 = sand.u32 %s169, 1
          %s734 = scalar_lea.sflag [#allocation10], %s733
          %s735 = sand.u32 %s169, 1
          %s736 = scalar_lea.vmem [#allocation15], %s735
          %737 = dma.done %s734, 16
        $region76: #{tpu_custom_call.1} parent=71 // pred_fallthru
          _
        // Predicated region
        $region77: #{tpu_custom_call.1} parent=71 // pred_check
          %p738 = pneg %p210
        $region78: #{tpu_custom_call.1} parent=71 // pred_check_branch
          %740 = sbr.rel (%p738) target = $region80
        $region79: #{tpu_custom_call.1} parent=71 // pred_region
          %s741 = sand.u32 %s195, 1
          %s742 = scalar_lea.sflag [#allocation17], %s741
          %s743 = sand.u32 %s195, 1
          %s744 = scalar_lea.vmem [#allocation16], %s743
          %745 = dma.done %s742, 16
        $region80: #{tpu_custom_call.1} parent=71 // pred_fallthru
          _
      $region72: #{tpu_custom_call.1} parent=5 // pred_fallthru
        _
    $region6: #{tpu_custom_call.1} parent=1 // loop_footer
      %s35 = sadd.s32 1, %s31
    $region7: #{tpu_custom_call.1} parent=1 // loop_footer_branch
      %30 = sbr.rel target = $region3
    $region8: #{tpu_custom_call.1} parent=1 // loop_exit
      _
    %746 = vsyncpa [#allocation9], 1
    %s747 = scalar_lea.sflag [#allocation9], 1
    %748 = vsyncpa %s747, 1
    %749 = vsyncpa [#allocation12], 1
    %750 = vsyncpa [#allocation10], 1
    %s751 = scalar_lea.sflag [#allocation10], 1
    %752 = vsyncpa %s751, 1
    %753 = vsyncpa [#allocation17], 1
    %s754 = scalar_lea.sflag [#allocation17], 1
    %755 = vsyncpa %s754, 1

</llo_original>
